<compile_context>
chip_gen: v7x
topology: tpu7x:2x2x1
jax: 0.10.0
libtpu: 0.0.40
codegen_flags: <defaults>
</compile_context>

<pallas_src>
import math

import jax
import jax.numpy as jnp
from jax import lax
from jax.experimental import pallas as pl
from jax.experimental.pallas import tpu as pltpu

C1 = 0.01 ** 2
C2 = 0.03 ** 2


# ----------------------------------------------------------------------------
# Gaussian window helpers (trace-time, plain JAX)
# ----------------------------------------------------------------------------
def _gaussian_1d(window_size, sigma):
    xs = jnp.arange(window_size, dtype=jnp.float32) - (window_size // 2)
    g = jnp.exp(-(xs ** 2) / (2.0 * sigma ** 2))
    return g / jnp.sum(g)


def _band_matrix(length, window_size, sigma):
    """(length, length) Toeplitz band M with (M @ x)[i] = sum_k g[k] x[i+k-pad],
    zero-padded at the borders (== 1-D slice of F.conv2d with padding=ws//2).
    Symmetric, so x @ M applies the same 'same' Gaussian along the other axis."""
    g = _gaussian_1d(window_size, sigma)
    pad = window_size // 2
    i = jnp.arange(length)[:, None]
    j = jnp.arange(length)[None, :]
    d = j - i + pad
    valid = (d >= 0) & (d < window_size)
    return jnp.where(valid, g[jnp.clip(d, 0, window_size - 1)], 0.0).astype(jnp.float32)


# ----------------------------------------------------------------------------
# Fused SSIM Pallas kernel
# ----------------------------------------------------------------------------
def _make_ssim_kernel(h_real, h_pad):
    def kernel(x1_ref, x2_ref, a_ref, b_ref, out_ref, s_ref, t_ref):
        hp, lanes = x1_ref.shape            # (Hp, L) with Hp%8==0, L%128==0
        x1 = x1_ref[...]
        x2 = x2_ref[...]

        # --- stack the 5 conv inputs along sublanes: one wide W-pass matmul ---
        s_ref[0 * hp:1 * hp, :] = x1
        s_ref[1 * hp:2 * hp, :] = x2
        s_ref[2 * hp:3 * hp, :] = x1 * x1
        s_ref[3 * hp:4 * hp, :] = x2 * x2
        s_ref[4 * hp:5 * hp, :] = x1 * x2

        # W-direction Gaussian (per lane-packed image, block-diagonal weight).
        t = jnp.dot(s_ref[...], b_ref[...], preferred_element_type=jnp.float32)

        # --- restack along lanes (tile-aligned slices): one wide H-pass matmul ---
        for i in range(5):
            t_ref[:, i * lanes:(i + 1) * lanes] = t[i * hp:(i + 1) * hp, :]
        g = jnp.dot(a_ref[...], t_ref[...], preferred_element_type=jnp.float32)

        mu1 = g[:, 0 * lanes:1 * lanes]
        mu2 = g[:, 1 * lanes:2 * lanes]
        e11 = g[:, 2 * lanes:3 * lanes]
        e22 = g[:, 3 * lanes:4 * lanes]
        e12 = g[:, 4 * lanes:5 * lanes]

        mu1_sq = mu1 * mu1
        mu2_sq = mu2 * mu2
        mu1_mu2 = mu1 * mu2
        sigma1_sq = e11 - mu1_sq
        sigma2_sq = e22 - mu2_sq
        sigma12 = e12 - mu1_mu2

        num = (2.0 * mu1_mu2 + C1) * (2.0 * sigma12 + C2)
        den = (mu1_sq + mu2_sq + C1) * (sigma1_sq + sigma2_sq + C2)
        r = pl.reciprocal(den, approx=True)     # EUP slot
        r = r * (2.0 - den * r)                 # one Newton step -> ~f32 accurate
        ssim_map = num * r

        if h_pad != h_real:                     # static: mask zero-padded rows
            rows = lax.broadcasted_iota(jnp.int32, ssim_map.shape, 0)
            ssim_map = jnp.where(rows < h_real, ssim_map, 0.0)

        # Lane-dense (1, L) partial result: per-column sums of the SSIM map.
        out_ref[...] = jnp.sum(ssim_map, axis=0, keepdims=True)

    return kernel


def ssim_forward(img1_nchw, img2_nchw, window_size=11, sigma=1.5, size_average=True):
    N, C, H, W = img1_nchw.shape
    B = N * C
    x1 = img1_nchw.astype(jnp.float32).reshape(B, H, W)
    x2 = img2_nchw.astype(jnp.float32).reshape(B, H, W)

    # ---- layout selection: lane-pack P images so the last block dim is 128-dense
    Hp = ((H + 7) // 8) * 8
    if W % 128 == 0:
        P, Ws = 1, W
    else:
        P = 128 // math.gcd(W, 128)
        if P * W <= 1024:
            Ws = W                                   # pack P whole images per 128k lanes
        else:
            P, Ws = 1, ((W + 127) // 128) * 128      # pad W instead of a huge pack
    L = P * Ws
    G = max(1, (B + P - 1) // P)                     # grid length (>=2 shards on v7x)
    Bp = G * P

    def prep(x):
        x = jnp.pad(x, ((0, Bp - B), (0, Hp - H), (0, Ws - W)))
        return x.reshape(G, P, Hp, Ws).transpose(0, 2, 1, 3).reshape(G * Hp, L)

    x1p, x2p = prep(x1), prep(x2)

    a_band = _band_matrix(Hp, window_size, sigma)                 # (Hp, Hp) H-direction
    b_band = _band_matrix(Ws, window_size, sigma)                 # (Ws, Ws) W-direction
    b_blk = jnp.kron(jnp.eye(P, dtype=jnp.float32), b_band) if P > 1 else b_band  # (L, L)

    # ---- VMEM budget derived from the actual block/scratch footprint ----
    blk = Hp * L * 4
    est = (2 * 2 * blk                      # 2 inputs, double-buffered
           + 2 * 4 * (Hp * Hp + L * L)      # weight blocks (double-buffered)
           + 2 * 4 * L                      # output block
           + 2 * 4 * (5 * Hp * L)           # the two scratch buffers
           + 24 * blk)                      # live elementwise/matmul temporaries
    try:
        phys_vmem = int(pltpu.get_tpu_info().vmem_capacity_bytes)
    except Exception:
        phys_vmem = 64 * 1024 * 1024        # conservative (v7x) fallback
    vmem_limit = int(min(max(2 * est, 32 * 1024 * 1024), phys_vmem * 3 // 4))

    colsums = pl.pallas_call(
        _make_ssim_kernel(H, Hp),
        grid=(G,),
        in_specs=[
            pl.BlockSpec((Hp, L), lambda g: (g, 0)),
            pl.BlockSpec((Hp, L), lambda g: (g, 0)),
            pl.BlockSpec((Hp, Hp), lambda g: (0, 0)),   # grid-invariant H weights
            pl.BlockSpec((L, L), lambda g: (0, 0)),     # grid-invariant W weights
        ],
        out_specs=pl.BlockSpec((1, L), lambda g: (g, 0)),
        out_shape=jax.ShapeDtypeStruct((G, L), jnp.float32),
        scratch_shapes=[
            pltpu.VMEM((5 * Hp, L), jnp.float32),       # sublane-stacked conv inputs
            pltpu.VMEM((Hp, 5 * L), jnp.float32),       # lane-stacked W-pass results
        ],
        compiler_params=pltpu.CompilerParams(
            dimension_semantics=("parallel",),
            vmem_limit_bytes=vmem_limit,
        ),
    )(x1p, x2p, a_band, b_blk)

    # ---- tiny epilogue: drop padded image slots / padded W columns, then mean ----
    per_img_cols = colsums.reshape(G * P, Ws)[:B, :W]   # (B, W) column sums of ssim_map
    if size_average:
        return jnp.sum(per_img_cols) / (B * H * W)
    # per-sample mean over (C, H, W) == ssim_map.mean(1).mean(1).mean(1)
    return jnp.sum(per_img_cols.reshape(N, C, W), axis=(1, 2)) / (C * H * W)


# ----------------------------------------------------------------------------
# Pure-JAX reference (XLA depthwise conv) for a sanity check
# ----------------------------------------------------------------------------
def ssim_reference(img1, img2, window_size=11, sigma=1.5):
    N, C, H, W = img1.shape
    g = _gaussian_1d(window_size, sigma)
    w2d = jnp.outer(g, g)
    kern = jnp.broadcast_to(w2d, (C, 1, window_size, window_size)).astype(jnp.float32)
    pad = window_size // 2

    def dwconv(x):
        return lax.conv_general_dilated(
            x.astype(jnp.float32), kern, (1, 1), [(pad, pad), (pad, pad)],
            dimension_numbers=("NCHW", "OIHW", "NCHW"), feature_group_count=C)

    mu1 = dwconv(img1)
    mu2 = dwconv(img2)
    mu1_sq, mu2_sq, mu1_mu2 = mu1 * mu1, mu2 * mu2, mu1 * mu2
    sigma1_sq = dwconv(img1 * img1) - mu1_sq
    sigma2_sq = dwconv(img2 * img2) - mu2_sq
    sigma12 = dwconv(img1 * img2) - mu1_mu2
    ssim_map = ((2.0 * mu1_mu2 + C1) * (2.0 * sigma12 + C2)) / \
               ((mu1_sq + mu2_sq + C1) * (sigma1_sq + sigma2_sq + C2))
    return jnp.mean(ssim_map)


if __name__ == "__main__":
    key = jax.random.PRNGKey(0)
    k1, k2 = jax.random.split(key)
    # Small shapes consistent with the module: batch=2, channels=4, 16x16 images.
    img1 = jax.random.uniform(k1, (2, 4, 16, 16), jnp.float32)
    img2 = jnp.clip(img1 + 0.1 * jax.random.normal(k2, (2, 4, 16, 16), jnp.float32),
                    0.0, 1.0)

    out = ssim_forward(img1, img2)
    out = jax.block_until_ready(out)

    ref = ssim_reference(img1, img2)
    ref = jax.block_until_ready(ref)
    if not jnp.allclose(out, ref, rtol=1e-3, atol=1e-3):
        raise AssertionError(f"Pallas SSIM {out} vs reference {ref}")
    print("KERNEL_OK")
</pallas_src>

<mosaic_0001>
module attributes {stable_mosaic.version = 11 : i64} {
  func.func @kernel(%arg0: i32, %arg1: memref<16x128xf32, #tpu.memory_space<vmem>>, %arg2: memref<16x128xf32, #tpu.memory_space<vmem>>, %arg3: memref<16x16xf32, #tpu.memory_space<vmem>>, %arg4: memref<128x128xf32, #tpu.memory_space<vmem>>, %arg5: memref<1x128xf32, #tpu.memory_space<vmem>>, %arg6: memref<80x128xf32, #tpu.memory_space<vmem>>, %arg7: memref<16x640xf32, #tpu.memory_space<vmem>>) attributes {dimension_semantics = [#tpu.dimension_semantics<parallel>], iteration_bounds = array<i64: 1>, scalar_prefetch = 0 : i64, scratch_operands = 2 : i64, tpu.core_type = #tpu.core_type<tc>, window_params = [{transform_indices = @transform_0, window_bounds = array<i64: 16, 128>}, {transform_indices = @transform_1, window_bounds = array<i64: 16, 128>}, {pipeline_mode = #tpu.pipeline_mode<synchronous>, transform_indices = @transform_2, window_bounds = array<i64: 16, 16>}, {pipeline_mode = #tpu.pipeline_mode<synchronous>, transform_indices = @transform_3, window_bounds = array<i64: 128, 128>}, {transform_indices = @transform_4, window_bounds = array<i64: 1, 128>}]} {
    %c0 = arith.constant 0 : index
    %c0_0 = arith.constant 0 : index
    %0 = vector.load %arg1[%c0, %c0_0] : memref<16x128xf32, #tpu.memory_space<vmem>>, vector<16x128xf32>
    %c0_1 = arith.constant 0 : index
    %c0_2 = arith.constant 0 : index
    %1 = vector.load %arg2[%c0_1, %c0_2] : memref<16x128xf32, #tpu.memory_space<vmem>>, vector<16x128xf32>
    %c0_3 = arith.constant 0 : index
    %c0_4 = arith.constant 0 : index
    %2 = vector.load %arg6[%c0_3, %c0_4] : memref<80x128xf32, #tpu.memory_space<vmem>>, vector<16x128xf32>
    tpu.vector_store %arg6[%c0_3, %c0_4], %0 {strides = array<i32>} : memref<80x128xf32, #tpu.memory_space<vmem>>, vector<16x128xf32>,
    %c16 = arith.constant 16 : index
    %c0_5 = arith.constant 0 : index
    %3 = vector.load %arg6[%c16, %c0_5] : memref<80x128xf32, #tpu.memory_space<vmem>>, vector<16x128xf32>
    tpu.vector_store %arg6[%c16, %c0_5], %1 {strides = array<i32>} : memref<80x128xf32, #tpu.memory_space<vmem>>, vector<16x128xf32>,
    %4 = arith.mulf %0, %0 : vector<16x128xf32>
    %c32 = arith.constant 32 : index
    %c0_6 = arith.constant 0 : index
    %5 = vector.load %arg6[%c32, %c0_6] : memref<80x128xf32, #tpu.memory_space<vmem>>, vector<16x128xf32>
    tpu.vector_store %arg6[%c32, %c0_6], %4 {strides = array<i32>} : memref<80x128xf32, #tpu.memory_space<vmem>>, vector<16x128xf32>,
    %6 = arith.mulf %1, %1 : vector<16x128xf32>
    %c48 = arith.constant 48 : index
    %c0_7 = arith.constant 0 : index
    %7 = vector.load %arg6[%c48, %c0_7] : memref<80x128xf32, #tpu.memory_space<vmem>>, vector<16x128xf32>
    tpu.vector_store %arg6[%c48, %c0_7], %6 {strides = array<i32>} : memref<80x128xf32, #tpu.memory_space<vmem>>, vector<16x128xf32>,
    %8 = arith.mulf %0, %1 : vector<16x128xf32>
    %c64 = arith.constant 64 : index
    %c0_8 = arith.constant 0 : index
    %9 = vector.load %arg6[%c64, %c0_8] : memref<80x128xf32, #tpu.memory_space<vmem>>, vector<16x128xf32>
    tpu.vector_store %arg6[%c64, %c0_8], %8 {strides = array<i32>} : memref<80x128xf32, #tpu.memory_space<vmem>>, vector<16x128xf32>,
    %c0_9 = arith.constant 0 : index
    %c0_10 = arith.constant 0 : index
    %10 = vector.load %arg6[%c0_9, %c0_10] : memref<80x128xf32, #tpu.memory_space<vmem>>, vector<80x128xf32>
    %c0_11 = arith.constant 0 : index
    %c0_12 = arith.constant 0 : index
    %11 = vector.load %arg4[%c0_11, %c0_12] : memref<128x128xf32, #tpu.memory_space<vmem>>, vector<128x128xf32>
    %cst = arith.constant dense<0.000000e+00> : vector<80x128xf32>
    %12 = tpu.matmul %10, %11, %cst {dimension_numbers = #tpu.dot_dimension_numbers<[1], [0], [0], [1], [0, 0, 1, 1], [], []>} : vector<80x128xf32>, vector<128x128xf32>, vector<80x128xf32> -> vector<80x128xf32>
    %13 = vector.extract_strided_slice %12 {offsets = [0, 0], sizes = [16, 128], strides = [1, 1]} : vector<80x128xf32> to vector<16x128xf32>
    %c0_13 = arith.constant 0 : index
    %c0_14 = arith.constant 0 : index
    %14 = vector.load %arg7[%c0_13, %c0_14] : memref<16x640xf32, #tpu.memory_space<vmem>>, vector<16x128xf32>
    tpu.vector_store %arg7[%c0_13, %c0_14], %13 {strides = array<i32>} : memref<16x640xf32, #tpu.memory_space<vmem>>, vector<16x128xf32>,
    %15 = vector.extract_strided_slice %12 {offsets = [16, 0], sizes = [16, 128], strides = [1, 1]} : vector<80x128xf32> to vector<16x128xf32>
    %c0_15 = arith.constant 0 : index
    %c128 = arith.constant 128 : index
    %16 = vector.load %arg7[%c0_15, %c128] : memref<16x640xf32, #tpu.memory_space<vmem>>, vector<16x128xf32>
    tpu.vector_store %arg7[%c0_15, %c128], %15 {strides = array<i32>} : memref<16x640xf32, #tpu.memory_space<vmem>>, vector<16x128xf32>,
    %17 = vector.extract_strided_slice %12 {offsets = [32, 0], sizes = [16, 128], strides = [1, 1]} : vector<80x128xf32> to vector<16x128xf32>
    %c0_16 = arith.constant 0 : index
    %c256 = arith.constant 256 : index
    %18 = vector.load %arg7[%c0_16, %c256] : memref<16x640xf32, #tpu.memory_space<vmem>>, vector<16x128xf32>
    tpu.vector_store %arg7[%c0_16, %c256], %17 {strides = array<i32>} : memref<16x640xf32, #tpu.memory_space<vmem>>, vector<16x128xf32>,
    %19 = vector.extract_strided_slice %12 {offsets = [48, 0], sizes = [16, 128], strides = [1, 1]} : vector<80x128xf32> to vector<16x128xf32>
    %c0_17 = arith.constant 0 : index
    %c384 = arith.constant 384 : index
    %20 = vector.load %arg7[%c0_17, %c384] : memref<16x640xf32, #tpu.memory_space<vmem>>, vector<16x128xf32>
    tpu.vector_store %arg7[%c0_17, %c384], %19 {strides = array<i32>} : memref<16x640xf32, #tpu.memory_space<vmem>>, vector<16x128xf32>,
    %21 = vector.extract_strided_slice %12 {offsets = [64, 0], sizes = [16, 128], strides = [1, 1]} : vector<80x128xf32> to vector<16x128xf32>
    %c0_18 = arith.constant 0 : index
    %c512 = arith.constant 512 : index
    %22 = vector.load %arg7[%c0_18, %c512] : memref<16x640xf32, #tpu.memory_space<vmem>>, vector<16x128xf32>
    tpu.vector_store %arg7[%c0_18, %c512], %21 {strides = array<i32>} : memref<16x640xf32, #tpu.memory_space<vmem>>, vector<16x128xf32>,
    %c0_19 = arith.constant 0 : index
    %c0_20 = arith.constant 0 : index
    %23 = vector.load %arg3[%c0_19, %c0_20] : memref<16x16xf32, #tpu.memory_space<vmem>>, vector<16x16xf32>
    %c0_21 = arith.constant 0 : index
    %c0_22 = arith.constant 0 : index
    %24 = vector.load %arg7[%c0_21, %c0_22] : memref<16x640xf32, #tpu.memory_space<vmem>>, vector<16x640xf32>
    %cst_23 = arith.constant dense<0.000000e+00> : vector<16x640xf32>
    %25 = tpu.matmul %23, %24, %cst_23 {dimension_numbers = #tpu.dot_dimension_numbers<[1], [0], [0], [1], [0, 0, 1, 1], [], []>} : vector<16x16xf32>, vector<16x640xf32>, vector<16x640xf32> -> vector<16x640xf32>
    %26 = vector.extract_strided_slice %25 {offsets = [0, 0], sizes = [16, 128], strides = [1, 1]} : vector<16x640xf32> to vector<16x128xf32>
    %27 = vector.extract_strided_slice %25 {offsets = [0, 128], sizes = [16, 128], strides = [1, 1]} : vector<16x640xf32> to vector<16x128xf32>
    %28 = vector.extract_strided_slice %25 {offsets = [0, 256], sizes = [16, 128], strides = [1, 1]} : vector<16x640xf32> to vector<16x128xf32>
    %29 = vector.extract_strided_slice %25 {offsets = [0, 384], sizes = [16, 128], strides = [1, 1]} : vector<16x640xf32> to vector<16x128xf32>
    %30 = vector.extract_strided_slice %25 {offsets = [0, 512], sizes = [16, 128], strides = [1, 1]} : vector<16x640xf32> to vector<16x128xf32>
    %31 = arith.mulf %26, %26 : vector<16x128xf32>
    %32 = arith.mulf %27, %27 : vector<16x128xf32>
    %33 = arith.mulf %26, %27 : vector<16x128xf32>
    %34 = arith.subf %28, %31 : vector<16x128xf32>
    %35 = arith.subf %29, %32 : vector<16x128xf32>
    %36 = arith.subf %30, %33 : vector<16x128xf32>
    %cst_24 = arith.constant 2.000000e+00 : f32
    %37 = vector.broadcast %cst_24 : f32 to vector<16x128xf32>
    %38 = arith.mulf %37, %33 : vector<16x128xf32>
    %cst_25 = arith.constant 9.99999974E-5 : f32
    %39 = vector.broadcast %cst_25 : f32 to vector<16x128xf32>
    %40 = arith.addf %38, %39 : vector<16x128xf32>
    %cst_26 = arith.constant 2.000000e+00 : f32
    %41 = vector.broadcast %cst_26 : f32 to vector<16x128xf32>
    %42 = arith.mulf %41, %36 : vector<16x128xf32>
    %cst_27 = arith.constant 8.99999984E-4 : f32
    %43 = vector.broadcast %cst_27 : f32 to vector<16x128xf32>
    %44 = arith.addf %42, %43 : vector<16x128xf32>
    %45 = arith.mulf %40, %44 : vector<16x128xf32>
    %46 = arith.addf %31, %32 : vector<16x128xf32>
    %cst_28 = arith.constant 9.99999974E-5 : f32
    %47 = vector.broadcast %cst_28 : f32 to vector<16x128xf32>
    %48 = arith.addf %46, %47 : vector<16x128xf32>
    %49 = arith.addf %34, %35 : vector<16x128xf32>
    %cst_29 = arith.constant 8.99999984E-4 : f32
    %50 = vector.broadcast %cst_29 : f32 to vector<16x128xf32>
    %51 = arith.addf %49, %50 : vector<16x128xf32>
    %52 = arith.mulf %48, %51 : vector<16x128xf32>
    %53 = tpu.reciprocal %52 {approx = true} : vector<16x128xf32> -> vector<16x128xf32>
    %54 = arith.mulf %52, %53 : vector<16x128xf32>
    %cst_30 = arith.constant 2.000000e+00 : f32
    %55 = vector.broadcast %cst_30 : f32 to vector<16x128xf32>
    %56 = arith.subf %55, %54 : vector<16x128xf32>
    %57 = arith.mulf %53, %56 : vector<16x128xf32>
    %58 = arith.mulf %45, %57 : vector<16x128xf32>
    %cst_31 = arith.constant dense<0.000000e+00> : vector<128xf32>
    %59 = vector.multi_reduction <add>, %58, %cst_31 [0] : vector<16x128xf32> to vector<128xf32>
    %60 = vector.shape_cast %59 : vector<128xf32> to vector<1x128xf32>
    %c0_32 = arith.constant 0 : index
    %c0_33 = arith.constant 0 : index
    %61 = vector.load %arg5[%c0_32, %c0_33] : memref<1x128xf32, #tpu.memory_space<vmem>>, vector<1x128xf32>
    tpu.vector_store %arg5[%c0_32, %c0_33], %60 {strides = array<i32>} : memref<1x128xf32, #tpu.memory_space<vmem>>, vector<1x128xf32>,
    return
  }
  func.func @transform_0(%arg0: i32) -> (i32, i32) {
    %c0_i32 = arith.constant 0 : i32
    %c0_i32_0 = arith.constant 0 : i32
    return %arg0, %c0_i32 : i32, i32
  }
  func.func @transform_1(%arg0: i32) -> (i32, i32) {
    %c0_i32 = arith.constant 0 : i32
    %c0_i32_0 = arith.constant 0 : i32
    return %arg0, %c0_i32 : i32, i32
  }
  func.func @transform_2(%arg0: i32) -> (i32, i32) {
    %c0_i32 = arith.constant 0 : i32
    %c0_i32_0 = arith.constant 0 : i32
    %c0_i32_1 = arith.constant 0 : i32
    return %c0_i32, %c0_i32_0 : i32, i32
  }
  func.func @transform_3(%arg0: i32) -> (i32, i32) {
    %c0_i32 = arith.constant 0 : i32
    %c0_i32_0 = arith.constant 0 : i32
    %c0_i32_1 = arith.constant 0 : i32
    return %c0_i32, %c0_i32_0 : i32, i32
  }
  func.func @transform_4(%arg0: i32) -> (i32, i32) {
    %c0_i32 = arith.constant 0 : i32
    %c0_i32_0 = arith.constant 0 : i32
    return %arg0, %c0_i32 : i32, i32
  }
}

</mosaic_0001>

<llo_original>
// kernel: tpu_custom_call.1
$region0: #{tpu_custom_call.1}
  #allocation0 [shape = 'u32[]', space=smem, size = 0x4, offset = 0x4, fixed_abs, tag = 'smem constant byte address 0x4 - core index']
  #allocation1 [shape = 'u32[144,128]{1,0:T(1,128)}', space=vmem, size = 0x12000, scoped, tag = 'internal scratch']
  #allocation2 [shape = 'f32[80,128]{1,0:T(8,128)}', space=vmem, size = 0xa000, scoped, tag = 'scratch operand']
  #allocation3 [shape = 'f32[16,640]{1,0:T(8,128)}', space=vmem, size = 0xa000, scoped, tag = 'scratch operand']
  %s0 = inlined_call_operand.hbm [shape: f32[16,128], index: 0, kind: input, shape index: {}]
  %s1 = inlined_call_operand.hbm [shape: f32[16,128], index: 1, kind: input, shape index: {}]
  %s2 = inlined_call_operand.hbm [shape: f32[16,16], index: 2, kind: input, shape index: {}]
  %s3 = inlined_call_operand.hbm [shape: f32[128,128], index: 3, kind: input, shape index: {}]
  %s4 = inlined_call_operand.hbm [shape: f32[1,128], index: 4, kind: output, shape index: {}]
  %s5 = sld [smem:[#allocation0]]
  $region42: #{tpu_custom_call.1} parent=0
    _
  %s7 = ssub.s32 1, %s5
  %s8 = scalar_select 0, %s7, %s5
  $region1: #{tpu_custom_call.1} parent=0
    #allocation4 [shape = 'u8[8192]{0}', space=vmem, size = 0x2000, scoped, tag = 'input window, operand 0, single buffered']
    #allocation5 [shape = 's32[1]{0}', space=sflag, size = 0x4, scoped, tag = 'scoped memory for tpu_custom_call.1']
    #allocation6 [shape = 's32[1]{0}', space=sflag, size = 0x4, scoped, tag = 'scoped memory for tpu_custom_call.1']
    #allocation7 [shape = 'u8[8192]{0}', space=vmem, size = 0x2000, scoped, tag = 'input window, operand 1, single buffered']
    #allocation8 [shape = 's32[1]{0}', space=sflag, size = 0x4, scoped, tag = 'scoped memory for tpu_custom_call.1']
    #allocation9 [shape = 'u8[8192]{0}', space=vmem, size = 0x2000, scoped, tag = 'input window, operand 2, single buffered']
    #allocation10 [shape = 'u8[65536]{0}', space=vmem, size = 0x10000, scoped, tag = 'input window, operand 3, single buffered']
    #allocation11 [shape = 's32[1]{0}', space=sflag, size = 0x4, scoped, tag = 'scoped memory for tpu_custom_call.1']
    #allocation12 [shape = 'u8[512]{0}', space=vmem, size = 0x400, scoped, tag = 'output window, operand 0, single buffered']
    %9 = vsyncpa [#allocation5], 0
    %10 = vsyncpa [#allocation8], 0
    %11 = vsyncpa [#allocation11], 0
    %12 = vsyncpa [#allocation6], 0
    // Predicated region
    $region2: #{tpu_custom_call.1} parent=1 // pred_check
      _
    $region3: #{tpu_custom_call.1} parent=1 // pred_check_branch
      %14 = sbr.rel (0) target = $region5
    $region4: #{tpu_custom_call.1} parent=1 // pred_region
      %s16 = ssub.s32 256, 256
      %17 = vsyncadd [#allocation5], %s16
      %s18 = sshll.u32 [#allocation4], 4
      %s19 = int_to_ptr.vmem [resolvable:$true] %s18
      %24 = dma.hbm_to_vmem [thread:$0]  %s0, 256, %s19, [#allocation5], 128, 128, 8
    $region5: #{tpu_custom_call.1} parent=1 // pred_fallthru
      _
    // Predicated region
    $region6: #{tpu_custom_call.1} parent=1 // pred_check
      _
    $region7: #{tpu_custom_call.1} parent=1 // pred_check_branch
      %26 = sbr.rel (0) target = $region9
    $region8: #{tpu_custom_call.1} parent=1 // pred_region
      %s28 = ssub.s32 256, 256
      %29 = vsyncadd [#allocation8], %s28
      %s30 = sshll.u32 [#allocation7], 4
      %s31 = int_to_ptr.vmem [resolvable:$true] %s30
      %36 = dma.hbm_to_vmem [thread:$0]  %s1, 256, %s31, [#allocation8], 128, 128, 8
    $region9: #{tpu_custom_call.1} parent=1 // pred_fallthru
      _
    // Predicated region
    $region10: #{tpu_custom_call.1} parent=1 // pred_check
      _
    $region11: #{tpu_custom_call.1} parent=1 // pred_check_branch
      %38 = sbr.rel (0) target = $region13
    $region12: #{tpu_custom_call.1} parent=1 // pred_region
      %s40 = ssub.s32 256, 256
      %41 = vsyncadd [#allocation8], %s40
      %s42 = sshll.u32 [#allocation9], 4
      %s43 = int_to_ptr.vmem [resolvable:$true] %s42
      %48 = dma.hbm_to_vmem [thread:$0]  %s2, 256, %s43, [#allocation8], 128, 128, 8
    $region13: #{tpu_custom_call.1} parent=1 // pred_fallthru
      _
    // Predicated region
    $region14: #{tpu_custom_call.1} parent=1 // pred_check
      _
    $region15: #{tpu_custom_call.1} parent=1 // pred_check_branch
      %50 = sbr.rel (0) target = $region17
    $region16: #{tpu_custom_call.1} parent=1 // pred_region
      %s52 = ssub.s32 2048, 2048
      %53 = vsyncadd [#allocation11], %s52
      %s54 = sshll.u32 [#allocation10], 4
      %s55 = int_to_ptr.vmem [resolvable:$true] %s54
      %60 = dma.hbm_to_vmem [thread:$0]  %s3, 2048, %s55, [#allocation11], 128, 128, 8
    $region17: #{tpu_custom_call.1} parent=1 // pred_fallthru
      _
    // Predicated region
    $region18: #{tpu_custom_call.1} parent=1 // pred_check
      _
    $region19: #{tpu_custom_call.1} parent=1 // pred_check_branch
      %62 = sbr.rel (0) target = $region21
    $region20: #{tpu_custom_call.1} parent=1 // pred_region
      %63 = dma.done [#allocation5], 256
    $region21: #{tpu_custom_call.1} parent=1 // pred_fallthru
      _
    // Predicated region
    $region22: #{tpu_custom_call.1} parent=1 // pred_check
      _
    $region23: #{tpu_custom_call.1} parent=1 // pred_check_branch
      %65 = sbr.rel (0) target = $region25
    $region24: #{tpu_custom_call.1} parent=1 // pred_region
      %66 = dma.done [#allocation8], 256
    $region25: #{tpu_custom_call.1} parent=1 // pred_fallthru
      _
    // Predicated region
    $region26: #{tpu_custom_call.1} parent=1 // pred_check
      _
    $region27: #{tpu_custom_call.1} parent=1 // pred_check_branch
      %68 = sbr.rel (0) target = $region29
    $region28: #{tpu_custom_call.1} parent=1 // pred_region
      %69 = dma.done [#allocation8], 256
    $region29: #{tpu_custom_call.1} parent=1 // pred_fallthru
      _
    // Predicated region
    $region30: #{tpu_custom_call.1} parent=1 // pred_check
      _
    $region31: #{tpu_custom_call.1} parent=1 // pred_check_branch
      %71 = sbr.rel (0) target = $region33
    $region32: #{tpu_custom_call.1} parent=1 // pred_region
      %72 = dma.done [#allocation11], 2048
    $region33: #{tpu_custom_call.1} parent=1 // pred_fallthru
      _
    %v73 = vld [vmem:[#allocation4] sm:$0xff]
    %v74 = vld [vmem:[#allocation4 + $0x8] sm:$0xff]
    %v75 = vld [vmem:[#allocation7] sm:$0xff]
    %v76 = vld [vmem:[#allocation7 + $0x8] sm:$0xff]
    %77 = vst [vmem:[#allocation2] sm:$0xff] %v73
    %78 = vst [vmem:[#allocation2 + $0x8] sm:$0xff] %v74
    %79 = vst [vmem:[#allocation2 + $0x10] sm:$0xff] %v75
    %80 = vst [vmem:[#allocation2 + $0x18] sm:$0xff] %v76
    %v81 = vmul.f32 %v73, %v73
    %v82 = vmul.f32 %v74, %v74
    %83 = vst [vmem:[#allocation2 + $0x20] sm:$0xff] %v81
    %84 = vst [vmem:[#allocation2 + $0x28] sm:$0xff] %v82
    %v85 = vmul.f32 %v75, %v75
    %v86 = vmul.f32 %v76, %v76
    %87 = vst [vmem:[#allocation2 + $0x30] sm:$0xff] %v85
    %88 = vst [vmem:[#allocation2 + $0x38] sm:$0xff] %v86
    %v89 = vmul.f32 %v73, %v75
    %v90 = vmul.f32 %v74, %v76
    %91 = vst [vmem:[#allocation2 + $0x40] sm:$0xff] %v89
    %92 = vst [vmem:[#allocation2 + $0x48] sm:$0xff] %v90
    %v93 = vld [vmem:[#allocation2] sm:$0xff]
    %v94 = vld [vmem:[#allocation2 + $0x8] sm:$0xff]
    %v95 = vld [vmem:[#allocation2 + $0x10] sm:$0xff]
    %v96 = vld [vmem:[#allocation2 + $0x18] sm:$0xff]
    %v97 = vld [vmem:[#allocation2 + $0x20] sm:$0xff]
    %v98 = vld [vmem:[#allocation2 + $0x28] sm:$0xff]
    %v99 = vld [vmem:[#allocation2 + $0x30] sm:$0xff]
    %v100 = vld [vmem:[#allocation2 + $0x38] sm:$0xff]
    %v101 = vld [vmem:[#allocation2 + $0x40] sm:$0xff]
    %v102 = vld [vmem:[#allocation2 + $0x48] sm:$0xff]
    %v103 = vld [vmem:[#allocation10] sm:$0xff]
    %v104 = vld [vmem:[#allocation10 + $0x8] sm:$0xff]
    %v105 = vld [vmem:[#allocation10 + $0x10] sm:$0xff]
    %v106 = vld [vmem:[#allocation10 + $0x18] sm:$0xff]
    %v107 = vld [vmem:[#allocation10 + $0x20] sm:$0xff]
    %v108 = vld [vmem:[#allocation10 + $0x28] sm:$0xff]
    %v109 = vld [vmem:[#allocation10 + $0x30] sm:$0xff]
    %v110 = vld [vmem:[#allocation10 + $0x38] sm:$0xff]
    %v111 = vld [vmem:[#allocation10 + $0x40] sm:$0xff]
    %v112 = vld [vmem:[#allocation10 + $0x48] sm:$0xff]
    %v113 = vld [vmem:[#allocation10 + $0x50] sm:$0xff]
    %v114 = vld [vmem:[#allocation10 + $0x58] sm:$0xff]
    %v115 = vld [vmem:[#allocation10 + $0x60] sm:$0xff]
    %v116 = vld [vmem:[#allocation10 + $0x68] sm:$0xff]
    %v117 = vld [vmem:[#allocation10 + $0x70] sm:$0xff]
    %v118 = vld [vmem:[#allocation10 + $0x78] sm:$0xff]
    %119 = vmatprep.subr.mxu0 0.0
    %120 = vmatpush1.msra.mxu0 %v103
    %121 = vmatprep.subr.mxu0 0.0
    %122 = vmatpush1.msra.mxu0 %v104
    %123 = vmatprep.subr.mxu0 0.0
    %124 = vmatpush1.msra.mxu0 %v105
    %125 = vmatprep.subr.mxu0 0.0
    %126 = vmatpush1.msra.mxu0 %v106
    %127 = vmatprep.subr.mxu0 0.0
    %128 = vmatpush1.msra.mxu0 %v107
    %129 = vmatprep.subr.mxu0 0.0
    %130 = vmatpush1.msra.mxu0 %v108
    %131 = vmatprep.subr.mxu0 0.0
    %132 = vmatpush1.msra.mxu0 %v109
    %133 = vmatprep.subr.mxu0 0.0
    %134 = vmatpush1.msra.mxu0 %v110
    %135 = vmatprep.subr.mxu0 0.0
    %136 = vmatpush1.msra.mxu0 %v111
    %137 = vmatprep.subr.mxu0 0.0
    %138 = vmatpush1.msra.mxu0 %v112
    %139 = vmatprep.subr.mxu0 0.0
    %140 = vmatpush1.msra.mxu0 %v113
    %141 = vmatprep.subr.mxu0 0.0
    %142 = vmatpush1.msra.mxu0 %v114
    %143 = vmatprep.subr.mxu0 0.0
    %144 = vmatpush1.msra.mxu0 %v115
    %145 = vmatprep.subr.mxu0 0.0
    %146 = vmatpush1.msra.mxu0 %v116
    %147 = vmatprep.subr.mxu0 0.0
    %148 = vmatpush1.msra.mxu0 %v117
    %149 = vmatprep.subr.mxu0 0.0
    %150 = vmatpush1.msra.mxu0 %v118
    %151 = vmatprep.subr.mxu0 0.0
    %152 = vmatpush1.msra.mxu0 0.0
    %153 = vmatprep.subr.mxu0 0.0
    %154 = vmatpush1.msra.mxu0 0.0
    %155 = vmatprep.subr.mxu0 0.0
    %156 = vmatpush1.msra.mxu0 0.0
    %157 = vmatprep.subr.mxu0 0.0
    %158 = vmatpush1.msra.mxu0 0.0
    %159 = vmatprep.subr.mxu0 0.0
    %160 = vmatpush1.msra.mxu0 0.0
    %161 = vmatprep.subr.mxu0 0.0
    %162 = vmatpush1.msra.mxu0 0.0
    %163 = vmatprep.subr.mxu0 0.0
    %164 = vmatpush1.msra.mxu0 0.0
    %165 = vmatprep.subr.mxu0 0.0
    %166 = vmatpush1.msra.mxu0 0.0
    %167 = vmatprep.subr.mxu0 0.0
    %168 = vmatpush1.msra.mxu0 0.0
    %169 = vmatprep.subr.mxu0 0.0
    %170 = vmatpush1.msra.mxu0 0.0
    %171 = vmatprep.subr.mxu0 0.0
    %172 = vmatpush1.msra.mxu0 0.0
    %173 = vmatprep.subr.mxu0 0.0
    %174 = vmatpush1.msra.mxu0 0.0
    %175 = vmatprep.subr.mxu0 0.0
    %176 = vmatpush1.msra.mxu0 0.0
    %177 = vmatprep.subr.mxu0 0.0
    %178 = vmatpush1.msra.mxu0 0.0
    %179 = vmatprep.subr.mxu0 0.0
    %180 = vmatpush1.msra.mxu0 0.0
    %181 = vmatprep.subr.mxu0 0.0
    %182 = vmatpush1.msra.mxu0 0.0
    %183 = vmatprep.mubr.f32.mxu0 0.0
    %184 = vmatmul.mubr.f32.gmra.mrb[0].mxu0 %v93
    %v185 = vpop.f32.mrb[0].mxu0
    %v186 = vadd.f32 0.0, %v185
    %v187 = vpop.f32.mrb[0].mxu0
    %188 = vmatprep.mubr.f32.mxu0 0.0
    %189 = vmatmul.mubr.f32.gmra.mrb[0].mxu0 %v94
    %v190 = vpop.f32.mrb[0].mxu0
    %v191 = vadd.f32 0.0, %v190
    %v192 = vpop.f32.mrb[0].mxu0
    %193 = vmatprep.mubr.f32.mxu0 0.0
    %194 = vmatmul.mubr.f32.gmra.mrb[0].mxu0 %v95
    %v195 = vpop.f32.mrb[0].mxu0
    %v196 = vadd.f32 0.0, %v195
    %v197 = vpop.f32.mrb[0].mxu0
    %198 = vmatprep.mubr.f32.mxu0 0.0
    %199 = vmatmul.mubr.f32.gmra.mrb[0].mxu0 %v96
    %v200 = vpop.f32.mrb[0].mxu0
    %v201 = vadd.f32 0.0, %v200
    %v202 = vpop.f32.mrb[0].mxu0
    %203 = vmatprep.mubr.f32.mxu0 0.0
    %204 = vmatmul.mubr.f32.gmra.mrb[0].mxu0 %v97
    %v205 = vpop.f32.mrb[0].mxu0
    %v206 = vadd.f32 0.0, %v205
    %v207 = vpop.f32.mrb[0].mxu0
    %208 = vmatprep.mubr.f32.mxu0 0.0
    %209 = vmatmul.mubr.f32.gmra.mrb[0].mxu0 %v98
    %v210 = vpop.f32.mrb[0].mxu0
    %v211 = vadd.f32 0.0, %v210
    %v212 = vpop.f32.mrb[0].mxu0
    %213 = vmatprep.mubr.f32.mxu0 0.0
    %214 = vmatmul.mubr.f32.gmra.mrb[0].mxu0 %v99
    %v215 = vpop.f32.mrb[0].mxu0
    %v216 = vadd.f32 0.0, %v215
    %v217 = vpop.f32.mrb[0].mxu0
    %218 = vmatprep.mubr.f32.mxu0 0.0
    %219 = vmatmul.mubr.f32.gmra.mrb[0].mxu0 %v100
    %v220 = vpop.f32.mrb[0].mxu0
    %v221 = vadd.f32 0.0, %v220
    %v222 = vpop.f32.mrb[0].mxu0
    %223 = vmatprep.mubr.f32.mxu0 0.0
    %224 = vmatmul.mubr.f32.gmra.mrb[0].mxu0 %v101
    %v225 = vpop.f32.mrb[0].mxu0
    %v226 = vadd.f32 0.0, %v225
    %v227 = vpop.f32.mrb[0].mxu0
    %228 = vmatprep.mubr.f32.mxu0 0.0
    %229 = vmatmul.mubr.f32.gmra.mrb[0].mxu0 %v102
    %v230 = vpop.f32.mrb[0].mxu0
    %v231 = vadd.f32 0.0, %v230
    %v232 = vpop.f32.mrb[0].mxu0
    %233 = vdwg.mxu0
    %234 = vst [vmem:[#allocation3] sm:$0xff] %v186
    %235 = vst [vmem:[#allocation3 + $0x28] sm:$0xff] %v191
    %236 = vst [vmem:[#allocation3 + $0x8] sm:$0xff] %v196
    %237 = vst [vmem:[#allocation3 + $0x30] sm:$0xff] %v201
    %238 = vst [vmem:[#allocation3 + $0x10] sm:$0xff] %v206
    %239 = vst [vmem:[#allocation3 + $0x38] sm:$0xff] %v211
    %240 = vst [vmem:[#allocation3 + $0x18] sm:$0xff] %v216
    %241 = vst [vmem:[#allocation3 + $0x40] sm:$0xff] %v221
    %242 = vst [vmem:[#allocation3 + $0x20] sm:$0xff] %v226
    %243 = vst [vmem:[#allocation3 + $0x48] sm:$0xff] %v231
    %v244 = vld [vmem:[#allocation9] sm:$0xff]
    %v245 = vld [vmem:[#allocation9 + $0x8] sm:$0xff]
    %v246 = vld [vmem:[#allocation3] sm:$0xff]
    %v247 = vld [vmem:[#allocation3 + $0x8] sm:$0xff]
    %v248 = vld [vmem:[#allocation3 + $0x10] sm:$0xff]
    %v249 = vld [vmem:[#allocation3 + $0x18] sm:$0xff]
    %v250 = vld [vmem:[#allocation3 + $0x20] sm:$0xff]
    %v251 = vld [vmem:[#allocation3 + $0x28] sm:$0xff]
    %v252 = vld [vmem:[#allocation3 + $0x30] sm:$0xff]
    %v253 = vld [vmem:[#allocation3 + $0x38] sm:$0xff]
    %v254 = vld [vmem:[#allocation3 + $0x40] sm:$0xff]
    %v255 = vld [vmem:[#allocation3 + $0x48] sm:$0xff]
    %vm256 = vcmask 130048
    %v258 = vsel %vm256, %v244, 0
    %v261 = vsel %vm256, %v245, 0
    %263 = vmatprep.subr.mxu0 %v247
    %264 = vmatpush1.msra.mxu0 %v246
    %265 = vmatprep.subr.mxu0 %v252
    %266 = vmatpush1.msra.mxu0 %v251
    %267 = vmatprep.subr.mxu0 0.0
    %268 = vmatpush1.msra.mxu0 0.0
    %269 = vmatprep.subr.mxu0 0.0
    %270 = vmatpush1.msra.mxu0 0.0
    %271 = vmatprep.subr.mxu0 0.0
    %272 = vmatpush1.msra.mxu0 0.0
    %273 = vmatprep.subr.mxu0 0.0
    %274 = vmatpush1.msra.mxu0 0.0
    %275 = vmatprep.subr.mxu0 0.0
    %276 = vmatpush1.msra.mxu0 0.0
    %277 = vmatprep.subr.mxu0 0.0
    %278 = vmatpush1.msra.mxu0 0.0
    %279 = vmatprep.subr.mxu0 0.0
    %280 = vmatpush1.msra.mxu0 0.0
    %281 = vmatprep.subr.mxu0 0.0
    %282 = vmatpush1.msra.mxu0 0.0
    %283 = vmatprep.subr.mxu0 0.0
    %284 = vmatpush1.msra.mxu0 0.0
    %285 = vmatprep.subr.mxu0 0.0
    %286 = vmatpush1.msra.mxu0 0.0
    %287 = vmatprep.subr.mxu0 0.0
    %288 = vmatpush1.msra.mxu0 0.0
    %289 = vmatprep.subr.mxu0 0.0
    %290 = vmatpush1.msra.mxu0 0.0
    %291 = vmatprep.subr.mxu0 0.0
    %292 = vmatpush1.msra.mxu0 0.0
    %293 = vmatprep.subr.mxu0 0.0
    %294 = vmatpush1.msra.mxu0 0.0
    %295 = vmatprep.subr.mxu0 0.0
    %296 = vmatpush1.msra.mxu0 0.0
    %297 = vmatprep.subr.mxu0 0.0
    %298 = vmatpush1.msra.mxu0 0.0
    %299 = vmatprep.subr.mxu0 0.0
    %300 = vmatpush1.msra.mxu0 0.0
    %301 = vmatprep.subr.mxu0 0.0
    %302 = vmatpush1.msra.mxu0 0.0
    %303 = vmatprep.subr.mxu0 0.0
    %304 = vmatpush1.msra.mxu0 0.0
    %305 = vmatprep.subr.mxu0 0.0
    %306 = vmatpush1.msra.mxu0 0.0
    %307 = vmatprep.subr.mxu0 0.0
    %308 = vmatpush1.msra.mxu0 0.0
    %309 = vmatprep.subr.mxu0 0.0
    %310 = vmatpush1.msra.mxu0 0.0
    %311 = vmatprep.subr.mxu0 0.0
    %312 = vmatpush1.msra.mxu0 0.0
    %313 = vmatprep.subr.mxu0 0.0
    %314 = vmatpush1.msra.mxu0 0.0
    %315 = vmatprep.subr.mxu0 0.0
    %316 = vmatpush1.msra.mxu0 0.0
    %317 = vmatprep.subr.mxu0 0.0
    %318 = vmatpush1.msra.mxu0 0.0
    %319 = vmatprep.subr.mxu0 0.0
    %320 = vmatpush1.msra.mxu0 0.0
    %321 = vmatprep.subr.mxu0 0.0
    %322 = vmatpush1.msra.mxu0 0.0
    %323 = vmatprep.subr.mxu0 0.0
    %324 = vmatpush1.msra.mxu0 0.0
    %325 = vmatprep.subr.mxu0 0.0
    %326 = vmatpush1.msra.mxu0 0.0
    %327 = vmatprep.mubr.f32.mxu0 0.0
    %328 = vmatmul.mubr.f32.gmra.mrb[0].mxu0 %v258
    %v329 = vpop.f32.mrb[0].mxu0
    %v330 = vadd.f32 0.0, %v329
    %v331 = vpop.f32.mrb[0].mxu0
    %v332 = vadd.f32 0.0, %v331
    %333 = vmatprep.mubr.f32.mxu0 0.0
    %334 = vmatmul.mubr.f32.gmra.mrb[0].mxu0 %v261
    %v335 = vpop.f32.mrb[0].mxu0
    %v336 = vadd.f32 0.0, %v335
    %v337 = vpop.f32.mrb[0].mxu0
    %v338 = vadd.f32 0.0, %v337
    %339 = vdwg.mxu0
    %340 = vmatprep.subr.mxu0 %v249
    %341 = vmatpush1.msra.mxu0 %v248
    %342 = vmatprep.subr.mxu0 %v254
    %343 = vmatpush1.msra.mxu0 %v253
    %344 = vmatprep.subr.mxu0 0.0
    %345 = vmatpush1.msra.mxu0 0.0
    %346 = vmatprep.subr.mxu0 0.0
    %347 = vmatpush1.msra.mxu0 0.0
    %348 = vmatprep.subr.mxu0 0.0
    %349 = vmatpush1.msra.mxu0 0.0
    %350 = vmatprep.subr.mxu0 0.0
    %351 = vmatpush1.msra.mxu0 0.0
    %352 = vmatprep.subr.mxu0 0.0
    %353 = vmatpush1.msra.mxu0 0.0
    %354 = vmatprep.subr.mxu0 0.0
    %355 = vmatpush1.msra.mxu0 0.0
    %356 = vmatprep.subr.mxu0 0.0
    %357 = vmatpush1.msra.mxu0 0.0
    %358 = vmatprep.subr.mxu0 0.0
    %359 = vmatpush1.msra.mxu0 0.0
    %360 = vmatprep.subr.mxu0 0.0
    %361 = vmatpush1.msra.mxu0 0.0
    %362 = vmatprep.subr.mxu0 0.0
    %363 = vmatpush1.msra.mxu0 0.0
    %364 = vmatprep.subr.mxu0 0.0
    %365 = vmatpush1.msra.mxu0 0.0
    %366 = vmatprep.subr.mxu0 0.0
    %367 = vmatpush1.msra.mxu0 0.0
    %368 = vmatprep.subr.mxu0 0.0
    %369 = vmatpush1.msra.mxu0 0.0
    %370 = vmatprep.subr.mxu0 0.0
    %371 = vmatpush1.msra.mxu0 0.0
    %372 = vmatprep.subr.mxu0 0.0
    %373 = vmatpush1.msra.mxu0 0.0
    %374 = vmatprep.subr.mxu0 0.0
    %375 = vmatpush1.msra.mxu0 0.0
    %376 = vmatprep.subr.mxu0 0.0
    %377 = vmatpush1.msra.mxu0 0.0
    %378 = vmatprep.subr.mxu0 0.0
    %379 = vmatpush1.msra.mxu0 0.0
    %380 = vmatprep.subr.mxu0 0.0
    %381 = vmatpush1.msra.mxu0 0.0
    %382 = vmatprep.subr.mxu0 0.0
    %383 = vmatpush1.msra.mxu0 0.0
    %384 = vmatprep.subr.mxu0 0.0
    %385 = vmatpush1.msra.mxu0 0.0
    %386 = vmatprep.subr.mxu0 0.0
    %387 = vmatpush1.msra.mxu0 0.0
    %388 = vmatprep.subr.mxu0 0.0
    %389 = vmatpush1.msra.mxu0 0.0
    %390 = vmatprep.subr.mxu0 0.0
    %391 = vmatpush1.msra.mxu0 0.0
    %392 = vmatprep.subr.mxu0 0.0
    %393 = vmatpush1.msra.mxu0 0.0
    %394 = vmatprep.subr.mxu0 0.0
    %395 = vmatpush1.msra.mxu0 0.0
    %396 = vmatprep.subr.mxu0 0.0
    %397 = vmatpush1.msra.mxu0 0.0
    %398 = vmatprep.subr.mxu0 0.0
    %399 = vmatpush1.msra.mxu0 0.0
    %400 = vmatprep.subr.mxu0 0.0
    %401 = vmatpush1.msra.mxu0 0.0
    %402 = vmatprep.subr.mxu0 0.0
    %403 = vmatpush1.msra.mxu0 0.0
    %404 = vmatprep.mubr.f32.mxu0 0.0
    %405 = vmatmul.mubr.f32.gmra.mrb[0].mxu0 %v258
    %v406 = vpop.f32.mrb[0].mxu0
    %v407 = vadd.f32 0.0, %v406
    %v408 = vpop.f32.mrb[0].mxu0
    %v409 = vadd.f32 0.0, %v408
    %410 = vmatprep.mubr.f32.mxu0 0.0
    %411 = vmatmul.mubr.f32.gmra.mrb[0].mxu0 %v261
    %v412 = vpop.f32.mrb[0].mxu0
    %v413 = vadd.f32 0.0, %v412
    %v414 = vpop.f32.mrb[0].mxu0
    %v415 = vadd.f32 0.0, %v414
    %416 = vdwg.mxu0
    %417 = vmatprep.subr.mxu0 0.0
    %418 = vmatpush1.msra.mxu0 %v250
    %419 = vmatprep.subr.mxu0 0.0
    %420 = vmatpush1.msra.mxu0 %v255
    %421 = vmatprep.subr.mxu0 0.0
    %422 = vmatpush1.msra.mxu0 0.0
    %423 = vmatprep.subr.mxu0 0.0
    %424 = vmatpush1.msra.mxu0 0.0
    %425 = vmatprep.subr.mxu0 0.0
    %426 = vmatpush1.msra.mxu0 0.0
    %427 = vmatprep.subr.mxu0 0.0
    %428 = vmatpush1.msra.mxu0 0.0
    %429 = vmatprep.subr.mxu0 0.0
    %430 = vmatpush1.msra.mxu0 0.0
    %431 = vmatprep.subr.mxu0 0.0
    %432 = vmatpush1.msra.mxu0 0.0
    %433 = vmatprep.subr.mxu0 0.0
    %434 = vmatpush1.msra.mxu0 0.0
    %435 = vmatprep.subr.mxu0 0.0
    %436 = vmatpush1.msra.mxu0 0.0
    %437 = vmatprep.subr.mxu0 0.0
    %438 = vmatpush1.msra.mxu0 0.0
    %439 = vmatprep.subr.mxu0 0.0
    %440 = vmatpush1.msra.mxu0 0.0
    %441 = vmatprep.subr.mxu0 0.0
    %442 = vmatpush1.msra.mxu0 0.0
    %443 = vmatprep.subr.mxu0 0.0
    %444 = vmatpush1.msra.mxu0 0.0
    %445 = vmatprep.subr.mxu0 0.0
    %446 = vmatpush1.msra.mxu0 0.0
    %447 = vmatprep.subr.mxu0 0.0
    %448 = vmatpush1.msra.mxu0 0.0
    %449 = vmatprep.subr.mxu0 0.0
    %450 = vmatpush1.msra.mxu0 0.0
    %451 = vmatprep.subr.mxu0 0.0
    %452 = vmatpush1.msra.mxu0 0.0
    %453 = vmatprep.subr.mxu0 0.0
    %454 = vmatpush1.msra.mxu0 0.0
    %455 = vmatprep.subr.mxu0 0.0
    %456 = vmatpush1.msra.mxu0 0.0
    %457 = vmatprep.subr.mxu0 0.0
    %458 = vmatpush1.msra.mxu0 0.0
    %459 = vmatprep.subr.mxu0 0.0
    %460 = vmatpush1.msra.mxu0 0.0
    %461 = vmatprep.subr.mxu0 0.0
    %462 = vmatpush1.msra.mxu0 0.0
    %463 = vmatprep.subr.mxu0 0.0
    %464 = vmatpush1.msra.mxu0 0.0
    %465 = vmatprep.subr.mxu0 0.0
    %466 = vmatpush1.msra.mxu0 0.0
    %467 = vmatprep.subr.mxu0 0.0
    %468 = vmatpush1.msra.mxu0 0.0
    %469 = vmatprep.subr.mxu0 0.0
    %470 = vmatpush1.msra.mxu0 0.0
    %471 = vmatprep.subr.mxu0 0.0
    %472 = vmatpush1.msra.mxu0 0.0
    %473 = vmatprep.subr.mxu0 0.0
    %474 = vmatpush1.msra.mxu0 0.0
    %475 = vmatprep.subr.mxu0 0.0
    %476 = vmatpush1.msra.mxu0 0.0
    %477 = vmatprep.subr.mxu0 0.0
    %478 = vmatpush1.msra.mxu0 0.0
    %479 = vmatprep.subr.mxu0 0.0
    %480 = vmatpush1.msra.mxu0 0.0
    %481 = vmatprep.mubr.f32.mxu0 0.0
    %482 = vmatmul.mubr.f32.gmra.mrb[0].mxu0 %v258
    %v483 = vpop.f32.mrb[0].mxu0
    %v484 = vadd.f32 0.0, %v483
    %v485 = vpop.f32.mrb[0].mxu0
    %486 = vmatprep.mubr.f32.mxu0 0.0
    %487 = vmatmul.mubr.f32.gmra.mrb[0].mxu0 %v261
    %v488 = vpop.f32.mrb[0].mxu0
    %v489 = vadd.f32 0.0, %v488
    %v490 = vpop.f32.mrb[0].mxu0
    %491 = vdwg.mxu0
    %v492 = vmul.f32 %v330, %v330
    %v493 = vmul.f32 %v336, %v336
    %v494 = vmul.f32 %v332, %v332
    %v495 = vmul.f32 %v338, %v338
    %v496 = vmul.f32 %v330, %v332
    %v497 = vmul.f32 %v336, %v338
    %v498 = vsub.f32 %v407, %v492
    %v499 = vsub.f32 %v413, %v493
    %v500 = vsub.f32 %v409, %v494
    %v501 = vsub.f32 %v415, %v495
    %v502 = vsub.f32 %v484, %v496
    %v503 = vsub.f32 %v489, %v497
    %v504 = vmul.f32 %v496, 2.0
    %v505 = vmul.f32 %v497, 2.0
    %v506 = vadd.f32 %v504, 0.0001
    %v507 = vadd.f32 %v505, 0.0001
    %v508 = vmul.f32 %v502, 2.0
    %v509 = vmul.f32 %v503, 2.0
    %v510 = vadd.f32 %v508, 0.0009
    %v511 = vadd.f32 %v509, 0.0009
    %v512 = vmul.f32 %v506, %v510
    %v513 = vmul.f32 %v507, %v511
    %v514 = vadd.f32 %v492, %v494
    %v515 = vadd.f32 %v493, %v495
    %v516 = vadd.f32 %v514, 0.0001
    %v517 = vadd.f32 %v515, 0.0001
    %v518 = vadd.f32 %v498, %v500
    %v519 = vadd.f32 %v499, %v501
    %v520 = vadd.f32 %v518, 0.0009
    %v521 = vadd.f32 %v519, 0.0009
    %v522 = vmul.f32 %v516, %v520
    %v523 = vmul.f32 %v517, %v521
    %v524 = vrcp.pop %v522
    %v525 = vrcp.pop %v523
    %v526 = vmul.f32 %v522, %v524
    %v527 = vmul.f32 %v523, %v525
    %v528 = vsub.f32 2.0, %v526
    %v529 = vsub.f32 2.0, %v527
    %v530 = vmul.f32 %v524, %v528
    %v531 = vmul.f32 %v525, %v529
    %v532 = vmul.f32 %v512, %v530
    %v533 = vmul.f32 %v513, %v531
    %v534 = vadd.f32 %v532, %v533
    %v535 = vrot.slane %v534, 4
    %v536 = vadd.f32 %v534, %v535
    %v537 = vrot.slane %v536, 2
    %v538 = vadd.f32 %v536, %v537
    %v539 = vrot.slane %v538, 1
    %v540 = vadd.f32 %v538, %v539
    %541 = vst [vmem:[#allocation12] sm:$0x1] %v540
    // Predicated region
    $region34: #{tpu_custom_call.1} parent=1 // pred_check
      _
    $region35: #{tpu_custom_call.1} parent=1 // pred_check_branch
      %543 = sbr.rel (0) target = $region37
    $region36: #{tpu_custom_call.1} parent=1 // pred_region
      %s545 = ssub.s32 16, 16
      %546 = vsyncadd [#allocation6], %s545
      %s548 = sshll.u32 [#allocation12], 4
      %s549 = int_to_ptr.vmem [resolvable:$true] %s548
      %551 = dma.vmem_to_hbm [thread:$0]  %s549, 16, %s4, [#allocation6]
    $region37: #{tpu_custom_call.1} parent=1 // pred_fallthru
      _
    // Predicated region
    $region38: #{tpu_custom_call.1} parent=1 // pred_check
      _
    $region39: #{tpu_custom_call.1} parent=1 // pred_check_branch
      %553 = sbr.rel (0) target = $region41
    $region40: #{tpu_custom_call.1} parent=1 // pred_region
      %554 = dma.done [#allocation6], 16
    $region41: #{tpu_custom_call.1} parent=1 // pred_fallthru
      _
    %555 = vsyncpa [#allocation5], 1
    %556 = vsyncpa [#allocation8], 1
    %557 = vsyncpa [#allocation11], 1
    %558 = vsyncpa [#allocation6], 1

</llo_original>
